<compile_context>
chip_gen: v7x
topology: tpu7x:2x2x1
jax: 0.10.0
libtpu: 0.0.40
codegen_flags: <defaults>
</compile_context>

<pallas_src>
import numpy as np
import jax
import jax.numpy as jnp
from jax.experimental import pallas as pl
from jax.experimental.pallas import tpu as pltpu


def _rope_kernel(w_ref, c1_ref, c2_ref, q_ref, k_ref, qo_ref, ko_ref):
    """One grid step: rotate a (tS, L) tile of q and of k.

    w_ref : (L, 2L) bf16 one-hot de-interleave weight (block-diag over g heads)
    c1_ref: (tS, L)  [cos | sin] per-position tables, tiled over the g heads
    c2_ref: (tS, L)  [-sin | cos]
    q_ref, k_ref, qo_ref, ko_ref: (tS, L) input / output tiles
    """
    L = w_ref.shape[0]
    w = w_ref[...]
    c1 = c1_ref[...].astype(jnp.float32)
    c2 = c2_ref[...].astype(jnp.float32)

    def deinterleave(x):
        # y[:, :L] = per-head cat([x_even, x_even]); y[:, L:] = cat([x_odd, x_odd]).
        if x.dtype == jnp.float32:
            # Error-free 3-way bf16 split of x: the one-hot weight is exact in bf16,
            # so three single-pass MXU matmuls reproduce x exactly (half the passes
            # of precision=HIGHEST, and no reliance on the precision enum lowering).
            x0 = x.astype(jnp.bfloat16)
            r = x - x0.astype(jnp.float32)
            x1 = r.astype(jnp.bfloat16)
            x2 = (r - x1.astype(jnp.float32)).astype(jnp.bfloat16)
            y = jnp.dot(x0, w, preferred_element_type=jnp.float32)
            y = y + jnp.dot(x1, w, preferred_element_type=jnp.float32)
            y = y + jnp.dot(x2, w, preferred_element_type=jnp.float32)
            return y
        # bf16 (and other sub-32-bit) inputs: single native pass, values pass through.
        return jnp.dot(x.astype(jnp.bfloat16), w, preferred_element_type=jnp.float32)

    def rotate(x_ref, o_ref):
        y = deinterleave(x_ref[...])                 # (tS, 2L) f32
        out = y[:, :L] * c1 + y[:, L:] * c2          # RoPE math in f32 on the VPU
        o_ref[...] = out.astype(o_ref.dtype)         # single lane-dense full store

    rotate(q_ref, qo_ref)
    rotate(k_ref, ko_ref)


class RotaryEmbedding:
    """Pallas-TPU port of the PyTorch RotaryEmbedding module (forward only)."""

    def __init__(self, dim: int, max_seq_len: int = 8192, base: int = 10000):
        assert dim % 2 == 0, "rotary dim must be even"
        self.dim = dim
        self.max_seq_len = max_seq_len
        self.base = base
        # inv_freq = 1 / base^(arange(0, dim, 2) / dim)   shape (dim/2,)
        self.inv_freq = 1.0 / (base ** (jnp.arange(0, dim, 2, dtype=jnp.float32) / dim))
        self._seq_len_cached = 0
        self._cos_cached = None      # (S, dim/2) f32 == cos(cat([freqs, freqs]))[:, ::2]
        self._sin_cached = None
        self._weight_cache = {}      # g -> (L, 2L) bf16 de-interleave weight
        self._table_cache = {}       # (S, g, dtype) -> (c1, c2)

    # ---- caches ---------------------------------------------------------------
    def _update_cos_sin_cache(self, seq_len: int):
        if seq_len > self._seq_len_cached:
            self._seq_len_cached = seq_len
            t = jnp.arange(seq_len, dtype=jnp.float32)
            freqs = jnp.outer(t, self.inv_freq)                  # (S, dim/2)
            emb = jnp.concatenate([freqs, freqs], axis=-1)       # (S, dim)
            # The torch module slices cos/sin with [..., ::2]; cache that compact form.
            self._cos_cached = jnp.cos(emb)[:, ::2]              # (S, dim/2)
            self._sin_cached = jnp.sin(emb)[:, ::2]
            self._table_cache.clear()

    def _deinterleave_weight(self, g: int) -> jax.Array:
        w = self._weight_cache.get(g)
        if w is None:
            d, dh = self.dim, self.dim // 2
            a = np.zeros((d, d), np.float32)      # x -> cat([x_even, x_even])
            b = np.zeros((d, d), np.float32)      # x -> cat([x_odd,  x_odd ])
            idx = np.arange(dh)
            a[2 * idx, idx] = 1.0
            a[2 * idx, dh + idx] = 1.0
            b[2 * idx + 1, idx] = 1.0
            b[2 * idx + 1, dh + idx] = 1.0
            eye = np.eye(g, dtype=np.float32)
            w_np = np.concatenate([np.kron(eye, a), np.kron(eye, b)], axis=1)  # (L, 2L)
            w = jnp.asarray(w_np, dtype=jnp.bfloat16)   # one-hot -> exact in bf16
            self._weight_cache[g] = w
        return w

    def _combo_tables(self, seq_len: int, g: int, dtype):
        key = (seq_len, g, jnp.dtype(dtype).name)
        tabs = self._table_cache.get(key)
        if tabs is None:
            cos = self._cos_cached[:seq_len]
            sin = self._sin_cached[:seq_len]
            c1 = jnp.concatenate([cos, sin], axis=-1)             # (S, dim)
            c2 = jnp.concatenate([-sin, cos], axis=-1)
            if g > 1:
                c1 = jnp.tile(c1, (1, g))                         # (S, L)
                c2 = jnp.tile(c2, (1, g))
            tabs = (c1.astype(dtype), c2.astype(dtype))
            self._table_cache[key] = tabs
        return tabs

    # ---- forward ----------------------------------------------------------------
    def __call__(self, q: jax.Array, k: jax.Array):
        assert q.ndim == 4 and q.shape == k.shape and q.dtype == k.dtype
        B, S, H, D = q.shape
        assert D == self.dim
        self._update_cos_sin_cache(S)

        # Head grouping: process g heads per grid step so the tile's lane width
        # L = g*D is a multiple of 128 (lane-dense loads/stores, no padding).  If no
        # divisor of H works, fall back to g = H (L == H*D == full minor dim).
        g = H
        for cand in range(1, H + 1):
            if H % cand == 0 and (cand * D) % 128 == 0:
                g = cand
                break
        L = g * D
        HD = H * D

        w = self._deinterleave_weight(g)
        tab_dtype = jnp.float32 if q.dtype == jnp.float32 else jnp.bfloat16
        c1, c2 = self._combo_tables(S, g, tab_dtype)

        # VMEM budget / seq tile: ~12 double-buffered (tS, L) buffers plus the f32
        # matmul intermediates; /96 keeps a comfortable margin on v7x's 64 MiB VMEM
        # while still giving ~4 MiB tiles on v5e/v6e's 128 MiB.
        try:
            vmem_cap = int(pltpu.get_tpu_info().vmem_capacity_bytes)
        except Exception:
            vmem_cap = 64 * 1024 * 1024            # conservative (v7x-sized) fallback
        vmem_limit = max(32 * 1024 * 1024, min(vmem_cap * 3 // 4, 96 * 1024 * 1024))
        max_elems = max(8 * L, vmem_limit // 96)   # elements per (tS, L) tile
        tS = max_elems // L
        if tS >= S:
            tS = S                                 # whole sequence fits one tile
        else:
            tS = max(8, (tS // 8) * 8)             # multiple-of-8 sublane tiles
        nS = pl.cdiv(S, tS)                        # tail tile handled by Pallas masking

        grid = (nS, B, H // g)                     # seq tiles first: megacore-friendly
        x_spec = pl.BlockSpec((None, tS, L), lambda s, b, hg: (b, s, hg))
        c_spec = pl.BlockSpec((tS, L), lambda s, b, hg: (s, 0))
        w_spec = pl.BlockSpec((L, 2 * L), lambda s, b, hg: (0, 0))

        q3 = q.reshape(B, S, HD)                   # free reshape: fold heads into lanes
        k3 = k.reshape(B, S, HD)

        q_out, k_out = pl.pallas_call(
            _rope_kernel,
            out_shape=(jax.ShapeDtypeStruct((B, S, HD), q.dtype),
                       jax.ShapeDtypeStruct((B, S, HD), k.dtype)),
            grid_spec=pltpu.PrefetchScalarGridSpec(
                num_scalar_prefetch=0,
                grid=grid,
                in_specs=[w_spec, c_spec, c_spec, x_spec, x_spec],
                out_specs=(x_spec, x_spec),
            ),
            compiler_params=pltpu.CompilerParams(
                dimension_semantics=("parallel", "parallel", "parallel"),
                vmem_limit_bytes=int(vmem_limit),
            ),
        )(w, c1, c2, q3, k3)
        return q_out.reshape(B, S, H, D), k_out.reshape(B, S, H, D)


def _reference(q, k, dim, base=10000):
    """Pure-JAX transcription of the PyTorch module, for correctness check."""
    S = q.shape[1]
    inv_freq = 1.0 / (base ** (jnp.arange(0, dim, 2, dtype=jnp.float32) / dim))
    t = jnp.arange(S, dtype=jnp.float32)
    freqs = jnp.outer(t, inv_freq)
    emb = jnp.concatenate([freqs, freqs], axis=-1)
    cos = jnp.cos(emb).reshape(1, S, 1, dim)
    sin = jnp.sin(emb).reshape(1, S, 1, dim)

    def apply(x):
        x1, x2 = x[..., ::2], x[..., 1::2]
        c, s = cos[..., ::2], sin[..., ::2]
        return jnp.concatenate([x1 * c - x2 * s, x1 * s + x2 * c], axis=-1)

    return apply(q), apply(k)


if __name__ == "__main__":
    key = jax.random.PRNGKey(0)

    # Config 1: small H, D < 128 (exercises the g = H / L = H*D path).
    B, S, H, D = 2, 8, 4, 32
    kq, kk, key = jax.random.split(key, 3)
    q = jax.random.normal(kq, (B, S, H, D), dtype=jnp.float32)
    k = jax.random.normal(kk, (B, S, H, D), dtype=jnp.float32)
    rope = RotaryEmbedding(dim=D)
    q_out, k_out = rope(q, k)
    jax.block_until_ready((q_out, k_out))
    q_ref, k_ref = _reference(q, k, D)
    np.testing.assert_allclose(np.asarray(q_out), np.asarray(q_ref), rtol=1e-5, atol=1e-5)
    np.testing.assert_allclose(np.asarray(k_out), np.asarray(k_ref), rtol=1e-5, atol=1e-5)

    # Config 2: D = 128, B = 1 (exercises the g = 1 lane-aligned path).
    B2, S2, H2, D2 = 1, 16, 2, 128
    kq2, kk2, key = jax.random.split(key, 3)
    q2 = jax.random.normal(kq2, (B2, S2, H2, D2), dtype=jnp.float32)
    k2 = jax.random.normal(kk2, (B2, S2, H2, D2), dtype=jnp.float32)
    rope2 = RotaryEmbedding(dim=D2)
    q2_out, k2_out = rope2(q2, k2)
    jax.block_until_ready((q2_out, k2_out))
    q2_ref, k2_ref = _reference(q2, k2, D2)
    np.testing.assert_allclose(np.asarray(q2_out), np.asarray(q2_ref), rtol=1e-5, atol=1e-5)
    np.testing.assert_allclose(np.asarray(k2_out), np.asarray(k2_ref), rtol=1e-5, atol=1e-5)

    print("KERNEL_OK")
</pallas_src>

<mosaic_0001>
module attributes {stable_mosaic.version = 11 : i64} {
  func.func @_rope_kernel(%arg0: i32, %arg1: i32, %arg2: i32, %arg3: memref<128x256xbf16, #tpu.memory_space<vmem>>, %arg4: memref<8x128xf32, #tpu.memory_space<vmem>>, %arg5: memref<8x128xf32, #tpu.memory_space<vmem>>, %arg6: memref<1x8x128xf32, #tpu.memory_space<vmem>>, %arg7: memref<1x8x128xf32, #tpu.memory_space<vmem>>, %arg8: memref<1x8x128xf32, #tpu.memory_space<vmem>>, %arg9: memref<1x8x128xf32, #tpu.memory_space<vmem>>) attributes {dimension_semantics = [#tpu.dimension_semantics<parallel>, #tpu.dimension_semantics<parallel>, #tpu.dimension_semantics<parallel>], iteration_bounds = array<i64: 1, 2, 1>, scalar_prefetch = 0 : i64, scratch_operands = 0 : i64, tpu.core_type = #tpu.core_type<tc>, window_params = [{pipeline_mode = #tpu.pipeline_mode<synchronous>, transform_indices = @transform_0, window_bounds = array<i64: 128, 256>}, {transform_indices = @transform_1, window_bounds = array<i64: 8, 128>}, {transform_indices = @transform_2, window_bounds = array<i64: 8, 128>}, {transform_indices = @transform_3, window_bounds = array<i64: 1, 8, 128>}, {transform_indices = @transform_4, window_bounds = array<i64: 1, 8, 128>}, {transform_indices = @transform_5, window_bounds = array<i64: 1, 8, 128>}, {transform_indices = @transform_6, window_bounds = array<i64: 1, 8, 128>}]} {
    %c0 = arith.constant 0 : index
    %c0_0 = arith.constant 0 : index
    %0 = vector.load %arg3[%c0, %c0_0] : memref<128x256xbf16, #tpu.memory_space<vmem>>, vector<128x256xbf16>
    %c0_1 = arith.constant 0 : index
    %c0_2 = arith.constant 0 : index
    %1 = vector.load %arg4[%c0_1, %c0_2] : memref<8x128xf32, #tpu.memory_space<vmem>>, vector<8x128xf32>
    %c0_3 = arith.constant 0 : index
    %c0_4 = arith.constant 0 : index
    %2 = vector.load %arg5[%c0_3, %c0_4] : memref<8x128xf32, #tpu.memory_space<vmem>>, vector<8x128xf32>
    %c0_5 = arith.constant 0 : index
    %c0_6 = arith.constant 0 : index
    %c0_7 = arith.constant 0 : index
    %3 = vector.load %arg6[%c0_5, %c0_6, %c0_7] : memref<1x8x128xf32, #tpu.memory_space<vmem>>, vector<1x8x128xf32>
    %4 = vector.shape_cast %3 : vector<1x8x128xf32> to vector<8x128xf32>
    %5 = arith.truncf %4 : vector<8x128xf32> to vector<8x128xbf16>
    %6 = arith.extf %5 : vector<8x128xbf16> to vector<8x128xf32>
    %7 = arith.subf %4, %6 : vector<8x128xf32>
    %8 = arith.truncf %7 : vector<8x128xf32> to vector<8x128xbf16>
    %9 = arith.extf %8 : vector<8x128xbf16> to vector<8x128xf32>
    %10 = arith.subf %7, %9 : vector<8x128xf32>
    %11 = arith.truncf %10 : vector<8x128xf32> to vector<8x128xbf16>
    %cst = arith.constant dense<0.000000e+00> : vector<8x256xf32>
    %12 = tpu.matmul %5, %0, %cst {dimension_numbers = #tpu.dot_dimension_numbers<[1], [0], [0], [1], [0, 0, 1, 1], [], []>} : vector<8x128xbf16>, vector<128x256xbf16>, vector<8x256xf32> -> vector<8x256xf32>
    %cst_8 = arith.constant dense<0.000000e+00> : vector<8x256xf32>
    %13 = tpu.matmul %8, %0, %cst_8 {dimension_numbers = #tpu.dot_dimension_numbers<[1], [0], [0], [1], [0, 0, 1, 1], [], []>} : vector<8x128xbf16>, vector<128x256xbf16>, vector<8x256xf32> -> vector<8x256xf32>
    %14 = arith.addf %12, %13 : vector<8x256xf32>
    %cst_9 = arith.constant dense<0.000000e+00> : vector<8x256xf32>
    %15 = tpu.matmul %11, %0, %cst_9 {dimension_numbers = #tpu.dot_dimension_numbers<[1], [0], [0], [1], [0, 0, 1, 1], [], []>} : vector<8x128xbf16>, vector<128x256xbf16>, vector<8x256xf32> -> vector<8x256xf32>
    %16 = arith.addf %14, %15 : vector<8x256xf32>
    %17 = vector.extract_strided_slice %16 {offsets = [0, 0], sizes = [8, 128], strides = [1, 1]} : vector<8x256xf32> to vector<8x128xf32>
    %18 = arith.mulf %17, %1 : vector<8x128xf32>
    %19 = vector.extract_strided_slice %16 {offsets = [0, 128], sizes = [8, 128], strides = [1, 1]} : vector<8x256xf32> to vector<8x128xf32>
    %20 = arith.mulf %19, %2 : vector<8x128xf32>
    %21 = arith.addf %18, %20 : vector<8x128xf32>
    %c0_10 = arith.constant 0 : index
    %c0_11 = arith.constant 0 : index
    %c0_12 = arith.constant 0 : index
    %22 = vector.load %arg8[%c0_10, %c0_11, %c0_12] : memref<1x8x128xf32, #tpu.memory_space<vmem>>, vector<1x8x128xf32>
    %23 = vector.shape_cast %22 : vector<1x8x128xf32> to vector<8x128xf32>
    %24 = vector.shape_cast %21 : vector<8x128xf32> to vector<1x8x128xf32>
    tpu.vector_store %arg8[%c0_10, %c0_11, %c0_12], %24 {strides = array<i32>} : memref<1x8x128xf32, #tpu.memory_space<vmem>>, vector<1x8x128xf32>,
    %c0_13 = arith.constant 0 : index
    %c0_14 = arith.constant 0 : index
    %c0_15 = arith.constant 0 : index
    %25 = vector.load %arg7[%c0_13, %c0_14, %c0_15] : memref<1x8x128xf32, #tpu.memory_space<vmem>>, vector<1x8x128xf32>
    %26 = vector.shape_cast %25 : vector<1x8x128xf32> to vector<8x128xf32>
    %27 = arith.truncf %26 : vector<8x128xf32> to vector<8x128xbf16>
    %28 = arith.extf %27 : vector<8x128xbf16> to vector<8x128xf32>
    %29 = arith.subf %26, %28 : vector<8x128xf32>
    %30 = arith.truncf %29 : vector<8x128xf32> to vector<8x128xbf16>
    %31 = arith.extf %30 : vector<8x128xbf16> to vector<8x128xf32>
    %32 = arith.subf %29, %31 : vector<8x128xf32>
    %33 = arith.truncf %32 : vector<8x128xf32> to vector<8x128xbf16>
    %cst_16 = arith.constant dense<0.000000e+00> : vector<8x256xf32>
    %34 = tpu.matmul %27, %0, %cst_16 {dimension_numbers = #tpu.dot_dimension_numbers<[1], [0], [0], [1], [0, 0, 1, 1], [], []>} : vector<8x128xbf16>, vector<128x256xbf16>, vector<8x256xf32> -> vector<8x256xf32>
    %cst_17 = arith.constant dense<0.000000e+00> : vector<8x256xf32>
    %35 = tpu.matmul %30, %0, %cst_17 {dimension_numbers = #tpu.dot_dimension_numbers<[1], [0], [0], [1], [0, 0, 1, 1], [], []>} : vector<8x128xbf16>, vector<128x256xbf16>, vector<8x256xf32> -> vector<8x256xf32>
    %36 = arith.addf %34, %35 : vector<8x256xf32>
    %cst_18 = arith.constant dense<0.000000e+00> : vector<8x256xf32>
    %37 = tpu.matmul %33, %0, %cst_18 {dimension_numbers = #tpu.dot_dimension_numbers<[1], [0], [0], [1], [0, 0, 1, 1], [], []>} : vector<8x128xbf16>, vector<128x256xbf16>, vector<8x256xf32> -> vector<8x256xf32>
    %38 = arith.addf %36, %37 : vector<8x256xf32>
    %39 = vector.extract_strided_slice %38 {offsets = [0, 0], sizes = [8, 128], strides = [1, 1]} : vector<8x256xf32> to vector<8x128xf32>
    %40 = arith.mulf %39, %1 : vector<8x128xf32>
    %41 = vector.extract_strided_slice %38 {offsets = [0, 128], sizes = [8, 128], strides = [1, 1]} : vector<8x256xf32> to vector<8x128xf32>
    %42 = arith.mulf %41, %2 : vector<8x128xf32>
    %43 = arith.addf %40, %42 : vector<8x128xf32>
    %c0_19 = arith.constant 0 : index
    %c0_20 = arith.constant 0 : index
    %c0_21 = arith.constant 0 : index
    %44 = vector.load %arg9[%c0_19, %c0_20, %c0_21] : memref<1x8x128xf32, #tpu.memory_space<vmem>>, vector<1x8x128xf32>
    %45 = vector.shape_cast %44 : vector<1x8x128xf32> to vector<8x128xf32>
    %46 = vector.shape_cast %43 : vector<8x128xf32> to vector<1x8x128xf32>
    tpu.vector_store %arg9[%c0_19, %c0_20, %c0_21], %46 {strides = array<i32>} : memref<1x8x128xf32, #tpu.memory_space<vmem>>, vector<1x8x128xf32>,
    return
  }
  func.func @transform_0(%arg0: i32, %arg1: i32, %arg2: i32) -> (i32, i32) {
    %c0_i32 = arith.constant 0 : i32
    %c0_i32_0 = arith.constant 0 : i32
    %c0_i32_1 = arith.constant 0 : i32
    return %c0_i32, %c0_i32_0 : i32, i32
  }
  func.func @transform_1(%arg0: i32, %arg1: i32, %arg2: i32) -> (i32, i32) {
    %c0_i32 = arith.constant 0 : i32
    %c0_i32_0 = arith.constant 0 : i32
    return %arg0, %c0_i32 : i32, i32
  }
  func.func @transform_2(%arg0: i32, %arg1: i32, %arg2: i32) -> (i32, i32) {
    %c0_i32 = arith.constant 0 : i32
    %c0_i32_0 = arith.constant 0 : i32
    return %arg0, %c0_i32 : i32, i32
  }
  func.func @transform_3(%arg0: i32, %arg1: i32, %arg2: i32) -> (i32, i32, i32) {
    %c0_i32 = arith.constant 0 : i32
    return %arg1, %arg0, %arg2 : i32, i32, i32
  }
  func.func @transform_4(%arg0: i32, %arg1: i32, %arg2: i32) -> (i32, i32, i32) {
    %c0_i32 = arith.constant 0 : i32
    return %arg1, %arg0, %arg2 : i32, i32, i32
  }
  func.func @transform_5(%arg0: i32, %arg1: i32, %arg2: i32) -> (i32, i32, i32) {
    %c0_i32 = arith.constant 0 : i32
    return %arg1, %arg0, %arg2 : i32, i32, i32
  }
  func.func @transform_6(%arg0: i32, %arg1: i32, %arg2: i32) -> (i32, i32, i32) {
    %c0_i32 = arith.constant 0 : i32
    return %arg1, %arg0, %arg2 : i32, i32, i32
  }
}

</mosaic_0001>

<llo_original>
// kernel: tpu_custom_call.1
$region0: #{tpu_custom_call.1}
  #allocation0 [shape = 'u32[]', space=smem, size = 0x4, offset = 0x4, fixed_abs, tag = 'smem constant byte address 0x4 - core index']
  #allocation1 [shape = 'u32[144,128]{1,0:T(1,128)}', space=vmem, size = 0x12000, scoped, tag = 'internal scratch']
  %s0 = inlined_call_operand.hbm [shape: bf16[128,256], index: 0, kind: input, shape index: {}]
  %s1 = inlined_call_operand.hbm [shape: f32[8,128], index: 1, kind: input, shape index: {}]
  %s2 = inlined_call_operand.hbm [shape: f32[8,128], index: 2, kind: input, shape index: {}]
  %s3 = inlined_call_operand.hbm [shape: f32[2,8,128], index: 3, kind: input, shape index: {}]
  %s4 = inlined_call_operand.hbm [shape: f32[2,8,128], index: 4, kind: input, shape index: {}]
  %s5 = inlined_call_operand.hbm [shape: f32[2,8,128], index: 5, kind: output, shape index: {0}]
  %s6 = inlined_call_operand.hbm [shape: f32[2,8,128], index: 6, kind: output, shape index: {1}]
  %7 = xla_tuple %s5, %s6
  %s8 = sld [smem:[#allocation0]]
  $region81: #{tpu_custom_call.1} parent=0
    _
  %s10 = ssub.s32 1, %s8
  %s11 = scalar_select 0, %s10, %s8
  $region1: #{tpu_custom_call.1} parent=0
    #allocation2 [shape = 'u8[65536]{0}', space=vmem, size = 0x10000, scoped, tag = 'input window, operand 0, single buffered']
    #allocation3 [shape = 's32[2]{0}', space=sflag, size = 0x8, scoped, tag = 'scoped memory for tpu_custom_call.1']
    #allocation4 [shape = 's32[2]{0}', space=sflag, size = 0x8, scoped, tag = 'scoped memory for tpu_custom_call.1']
    #allocation5 [shape = 'u8[4096]{0}', space=vmem, size = 0x1000, scoped, tag = 'input window, operand 1, single buffered']
    #allocation6 [shape = 's32[1]{0}', space=sflag, size = 0x4, scoped, tag = 'scoped memory for tpu_custom_call.1']
    #allocation7 [shape = 'u8[4096]{0}', space=vmem, size = 0x1000, scoped, tag = 'input window, operand 2, single buffered']
    #allocation8 [shape = 'u8[8192]{0}', space=vmem, size = 0x2000, scoped, tag = 'input window, operand 3']
    #allocation9 [shape = 's32[2]{0}', space=sflag, size = 0x8, scoped, tag = 'scoped memory for tpu_custom_call.1']
    #allocation10 [shape = 'u8[8192]{0}', space=vmem, size = 0x2000, scoped, tag = 'input window, operand 4']
    #allocation11 [shape = 'u8[8192]{0}', space=vmem, size = 0x2000, scoped, tag = 'output window, operand 0']
    #allocation12 [shape = 'u8[8192]{0}', space=vmem, size = 0x2000, scoped, tag = 'output window, operand 1']
    #allocation13 [shape = 's32[2]{0}', space=sflag, size = 0x8, scoped, tag = 'scoped memory for tpu_custom_call.1']
    %12 = vsyncpa [#allocation3], 0
    %13 = vsyncpa [#allocation6], 0
    %14 = vsyncpa [#allocation9], 0
    %s15 = scalar_lea.sflag [#allocation9], 1
    %16 = vsyncpa %s15, 0
    %17 = vsyncpa [#allocation4], 0
    %s18 = scalar_lea.sflag [#allocation4], 1
    %19 = vsyncpa %s18, 0
    %20 = vsyncpa [#allocation13], 0
    %s21 = scalar_lea.sflag [#allocation13], 1
    %22 = vsyncpa %s21, 0
    loop: start=0, step=1, limit=4
    $region2: #{tpu_custom_call.1} parent=1 // loop_pre_header
      _
    $region3: #{tpu_custom_call.1} parent=1 // loop_header
      %s24 = sphi 0, %s28
      %p25 = scmp.ge.s32.totalorder %s24, 4
      %s31 = sphi 0, %s50
      %s32 = sphi 0, %s46
      %s33 = sphi 0, %s42
      %s34 = sphi 0, %s31
      %s35 = sphi 0, %s32
      %s36 = sphi 0, %s33
      %s37 = sphi 0, %s34
      %s38 = sphi 0, %s35
      %s39 = sphi 0, %s36
      %s51 = sphi 0, %s51
      %s53 = sphi 0, %s51
      %s54 = sphi 0, %s53
      %s68 = sphi 0, %s54
      %s74 = sphi 0, %s76
      %s77 = sphi 0, %s74
      %s78 = sphi 0, %s77
      %s94 = sphi 0, %s78
      %s100 = sphi 0, %s102
      %s103 = sphi 0, %s100
      %s104 = sphi 0, %s103
      %s120 = sphi 0, %s104
      %s130 = sphi 0, %s132
      %s133 = sphi 0, %s130
      %s134 = sphi 0, %s133
      %s150 = sphi 0, %s134
      %s160 = sphi 0, %s162
      %s163 = sphi 0, %s160
      %s164 = sphi 0, %s163
      %s180 = sphi 0, %s164
      %s190 = sphi 0, %s192
      %s193 = sphi 0, %s190
      %s194 = sphi 0, %s193
      %s210 = sphi 0, %s194
      %s220 = sphi 0, %s222
      %s223 = sphi 0, %s220
      %s224 = sphi 0, %s223
      %s240 = sphi 0, %s224
    $region4: #{tpu_custom_call.1} parent=1 // loop_header_branch
      %27 = sbr.rel (%p25) target = $region8
    $region5: #{tpu_custom_call.1} parent=1 // loop_body
      %s29 = ssub.s32 %s24, 1
      %s30 = ssub.s32 %s24, 2
      %s40 = sadd.s32 1, %s33
      %p41 = scmp.ge.s32.totalorder %s40, 1
      %s42 = scalar_select %p41, 0, %s40
      %s43 = sadd.s32 1, %s32
      %s44 = scalar_select %p41, %s43, %s32
      %p45 = scmp.ge.s32.totalorder %s44, 2
      %s46 = scalar_select %p45, 0, %s44
      %s47 = sadd.s32 1, %s31
      %s48 = scalar_select %p45, %s47, %s31
      %p49 = scmp.ge.s32.totalorder %s48, 1
      %s50 = scalar_select %p49, 0, %s48
      %s52 = sadd.s32 %s51, 1
      %p55 = scmp.eq.s32.totalorder %s24, 1
      %p56 = scmp.ne.s32.totalorder %s51, %s53
      %p57 = scmp.eq.s32.totalorder %s24, 0
      %p58 = por %p56, %p57
      %p59 = scmp.ne.s32.totalorder %s51, %s53
      %p60 = scmp.eq.s32.totalorder %s29, 1
      %p61 = por %p59, %p60
      %p62 = scmp.ne.s32.totalorder %s53, %s54
      %p63 = scmp.eq.s32.totalorder %s29, 0
      %p64 = por %p62, %p63
      %p65 = scmp.ne.s32.totalorder %s53, %s54
      %p66 = scmp.eq.s32.totalorder %s30, 1
      %p67 = por %p65, %p66
      %p69 = scmp.ne.s32.totalorder %s54, %s68
      %p70 = scmp.eq.s32.totalorder %s30, 0
      %p71 = por %p69, %p70
      %s72 = ssub.s32 %s31, %s50
      %p73 = scmp.eq.s32.totalorder %s72, 0
      %s75 = sadd.s32 %s74, 1
      %s76 = scalar_select %p73, %s74, %s75
      %p79 = pneg %p73
      %p80 = scmp.eq.s32.totalorder %s24, 1
      %p81 = por %p79, %p80
      %p82 = scmp.ne.s32.totalorder %s74, %s77
      %p83 = scmp.eq.s32.totalorder %s24, 0
      %p84 = por %p82, %p83
      %p85 = scmp.ne.s32.totalorder %s74, %s77
      %p86 = scmp.eq.s32.totalorder %s29, 1
      %p87 = por %p85, %p86
      %p88 = scmp.ne.s32.totalorder %s77, %s78
      %p89 = scmp.eq.s32.totalorder %s29, 0
      %p90 = por %p88, %p89
      %p91 = scmp.ne.s32.totalorder %s77, %s78
      %p92 = scmp.eq.s32.totalorder %s30, 1
      %p93 = por %p91, %p92
      %p95 = scmp.ne.s32.totalorder %s78, %s94
      %p96 = scmp.eq.s32.totalorder %s30, 0
      %p97 = por %p95, %p96
      %s98 = ssub.s32 %s31, %s50
      %p99 = scmp.eq.s32.totalorder %s98, 0
      %s101 = sadd.s32 %s100, 1
      %s102 = scalar_select %p99, %s100, %s101
      %p105 = pneg %p99
      %p106 = scmp.eq.s32.totalorder %s24, 1
      %p107 = por %p105, %p106
      %p108 = scmp.ne.s32.totalorder %s100, %s103
      %p109 = scmp.eq.s32.totalorder %s24, 0
      %p110 = por %p108, %p109
      %p111 = scmp.ne.s32.totalorder %s100, %s103
      %p112 = scmp.eq.s32.totalorder %s29, 1
      %p113 = por %p111, %p112
      %p114 = scmp.ne.s32.totalorder %s103, %s104
      %p115 = scmp.eq.s32.totalorder %s29, 0
      %p116 = por %p114, %p115
      %p117 = scmp.ne.s32.totalorder %s103, %s104
      %p118 = scmp.eq.s32.totalorder %s30, 1
      %p119 = por %p117, %p118
      %p121 = scmp.ne.s32.totalorder %s104, %s120
      %p122 = scmp.eq.s32.totalorder %s30, 0
      %p123 = por %p121, %p122
      %s124 = ssub.s32 %s32, %s46
      %s125 = ssub.s32 %s31, %s50
      %s126 = sor.u32 %s124, %s125
      %s127 = ssub.s32 %s33, %s42
      %s128 = sor.u32 %s126, %s127
      %p129 = scmp.eq.s32.totalorder %s128, 0
      %s131 = sadd.s32 %s130, 1
      %s132 = scalar_select %p129, %s130, %s131
      %p135 = pneg %p129
      %p136 = scmp.eq.s32.totalorder %s24, 1
      %p137 = por %p135, %p136
      %p138 = scmp.ne.s32.totalorder %s130, %s133
      %p139 = scmp.eq.s32.totalorder %s24, 0
      %p140 = por %p138, %p139
      %p141 = scmp.ne.s32.totalorder %s130, %s133
      %p142 = scmp.eq.s32.totalorder %s29, 1
      %p143 = por %p141, %p142
      %p144 = scmp.ne.s32.totalorder %s133, %s134
      %p145 = scmp.eq.s32.totalorder %s29, 0
      %p146 = por %p144, %p145
      %p147 = scmp.ne.s32.totalorder %s133, %s134
      %p148 = scmp.eq.s32.totalorder %s30, 1
      %p149 = por %p147, %p148
      %p151 = scmp.ne.s32.totalorder %s134, %s150
      %p152 = scmp.eq.s32.totalorder %s30, 0
      %p153 = por %p151, %p152
      %s154 = ssub.s32 %s32, %s46
      %s155 = ssub.s32 %s31, %s50
      %s156 = sor.u32 %s154, %s155
      %s157 = ssub.s32 %s33, %s42
      %s158 = sor.u32 %s156, %s157
      %p159 = scmp.eq.s32.totalorder %s158, 0
      %s161 = sadd.s32 %s160, 1
      %s162 = scalar_select %p159, %s160, %s161
      %p165 = pneg %p159
      %p166 = scmp.eq.s32.totalorder %s24, 1
      %p167 = por %p165, %p166
      %p168 = scmp.ne.s32.totalorder %s160, %s163
      %p169 = scmp.eq.s32.totalorder %s24, 0
      %p170 = por %p168, %p169
      %p171 = scmp.ne.s32.totalorder %s160, %s163
      %p172 = scmp.eq.s32.totalorder %s29, 1
      %p173 = por %p171, %p172
      %p174 = scmp.ne.s32.totalorder %s163, %s164
      %p175 = scmp.eq.s32.totalorder %s29, 0
      %p176 = por %p174, %p175
      %p177 = scmp.ne.s32.totalorder %s163, %s164
      %p178 = scmp.eq.s32.totalorder %s30, 1
      %p179 = por %p177, %p178
      %p181 = scmp.ne.s32.totalorder %s164, %s180
      %p182 = scmp.eq.s32.totalorder %s30, 0
      %p183 = por %p181, %p182
      %s184 = ssub.s32 %s32, %s46
      %s185 = ssub.s32 %s31, %s50
      %s186 = sor.u32 %s184, %s185
      %s187 = ssub.s32 %s33, %s42
      %s188 = sor.u32 %s186, %s187
      %p189 = scmp.eq.s32.totalorder %s188, 0
      %s191 = sadd.s32 %s190, 1
      %s192 = scalar_select %p189, %s190, %s191
      %p195 = pneg %p189
      %p196 = scmp.eq.s32.totalorder %s24, 1
      %p197 = por %p195, %p196
      %p198 = scmp.ne.s32.totalorder %s190, %s193
      %p199 = scmp.eq.s32.totalorder %s24, 0
      %p200 = por %p198, %p199
      %p201 = scmp.ne.s32.totalorder %s190, %s193
      %p202 = scmp.eq.s32.totalorder %s29, 1
      %p203 = por %p201, %p202
      %p204 = scmp.ne.s32.totalorder %s193, %s194
      %p205 = scmp.eq.s32.totalorder %s29, 0
      %p206 = por %p204, %p205
      %p207 = scmp.ne.s32.totalorder %s193, %s194
      %p208 = scmp.eq.s32.totalorder %s30, 1
      %p209 = por %p207, %p208
      %p211 = scmp.ne.s32.totalorder %s194, %s210
      %p212 = scmp.eq.s32.totalorder %s30, 0
      %p213 = por %p211, %p212
      %s214 = ssub.s32 %s32, %s46
      %s215 = ssub.s32 %s31, %s50
      %s216 = sor.u32 %s214, %s215
      %s217 = ssub.s32 %s33, %s42
      %s218 = sor.u32 %s216, %s217
      %p219 = scmp.eq.s32.totalorder %s218, 0
      %s221 = sadd.s32 %s220, 1
      %s222 = scalar_select %p219, %s220, %s221
      %p225 = pneg %p219
      %p226 = scmp.eq.s32.totalorder %s24, 1
      %p227 = por %p225, %p226
      %p228 = scmp.ne.s32.totalorder %s220, %s223
      %p229 = scmp.eq.s32.totalorder %s24, 0
      %p230 = por %p228, %p229
      %p231 = scmp.ne.s32.totalorder %s220, %s223
      %p232 = scmp.eq.s32.totalorder %s29, 1
      %p233 = por %p231, %p232
      %p234 = scmp.ne.s32.totalorder %s223, %s224
      %p235 = scmp.eq.s32.totalorder %s29, 0
      %p236 = por %p234, %p235
      %p237 = scmp.ne.s32.totalorder %s223, %s224
      %p238 = scmp.eq.s32.totalorder %s30, 1
      %p239 = por %p237, %p238
      %p241 = scmp.ne.s32.totalorder %s224, %s240
      %p242 = scmp.eq.s32.totalorder %s30, 0
      %p243 = por %p241, %p242
      %p244 = scmp.le.s32.totalorder 1, %s24
      %p245 = scmp.lt.s32.totalorder %s24, 3
      %p246 = pnand %p244, %p245
      %p247 = pneg %p246
      // Predicated region
      $region9: #{tpu_custom_call.1} parent=5 // pred_check
        _
      $region10: #{tpu_custom_call.1} parent=5 // pred_check_branch
        %249 = sbr.rel (%p246) target = $region12
      $region11: #{tpu_custom_call.1} parent=5 // pred_region
        %s250 = ssub.s32 %s24, 1
        // Predicated region
        $region13: #{tpu_custom_call.1} parent=11 // pred_check
          %p251 = pneg %p64
        $region14: #{tpu_custom_call.1} parent=11 // pred_check_branch
          %253 = sbr.rel (%p251) target = $region16
        $region15: #{tpu_custom_call.1} parent=11 // pred_region
          %s255 = ssub.s32 2048, 2048
          %256 = vsyncadd [#allocation3], %s255
          %s257 = sshll.u32 [#allocation2], 4
          %s258 = int_to_ptr.vmem [resolvable:$true] %s257
          %263 = dma.hbm_to_vmem [thread:$0]  %s0, 2048, %s258, [#allocation3], 128, 128, 8
        $region16: #{tpu_custom_call.1} parent=11 // pred_fallthru
          _
        // Predicated region
        $region17: #{tpu_custom_call.1} parent=11 // pred_check
          %p264 = pneg %p90
        $region18: #{tpu_custom_call.1} parent=11 // pred_check_branch
          %266 = sbr.rel (%p264) target = $region20
        $region19: #{tpu_custom_call.1} parent=11 // pred_region
          %s268 = ssub.s32 128, 128
          %269 = vsyncadd [#allocation6], %s268
          %s270 = smul.addr %s34, 128
          %s271 = scalar_lea.hbm %s1, %s270
          %s273 = sshll.u32 [#allocation5], 4
          %s274 = int_to_ptr.vmem [resolvable:$true] %s273
          %276 = dma.hbm_to_vmem [thread:$0]  %s271, 128, %s274, [#allocation6]
        $region20: #{tpu_custom_call.1} parent=11 // pred_fallthru
          _
        // Predicated region
        $region21: #{tpu_custom_call.1} parent=11 // pred_check
          %p277 = pneg %p116
        $region22: #{tpu_custom_call.1} parent=11 // pred_check_branch
          %279 = sbr.rel (%p277) target = $region24
        $region23: #{tpu_custom_call.1} parent=11 // pred_region
          %s281 = ssub.s32 128, 128
          %282 = vsyncadd [#allocation6], %s281
          %s283 = smul.addr %s34, 128
          %s284 = scalar_lea.hbm %s2, %s283
          %s286 = sshll.u32 [#allocation7], 4
          %s287 = int_to_ptr.vmem [resolvable:$true] %s286
          %289 = dma.hbm_to_vmem [thread:$0]  %s284, 128, %s287, [#allocation6]
        $region24: #{tpu_custom_call.1} parent=11 // pred_fallthru
          _
      $region12: #{tpu_custom_call.1} parent=5 // pred_fallthru
        _
      %p290 = scmp.lt.s32.totalorder %s24, 2
      // Predicated region
      $region25: #{tpu_custom_call.1} parent=5 // pred_check
        %p291 = pneg %p290
      $region26: #{tpu_custom_call.1} parent=5 // pred_check_branch
        %293 = sbr.rel (%p291) target = $region28
      $region27: #{tpu_custom_call.1} parent=5 // pred_region
        // Predicated region
        $region29: #{tpu_custom_call.1} parent=27 // pred_check
          %p294 = pneg %p140
        $region30: #{tpu_custom_call.1} parent=27 // pred_check_branch
          %296 = sbr.rel (%p294) target = $region32
        $region31: #{tpu_custom_call.1} parent=27 // pred_region
          %s297 = sand.u32 %s24, 1
          %s298 = scalar_lea.sflag [#allocation9], %s297
          %s299 = sand.u32 %s130, 1
          %s300 = smul.addr %s299, 8
          %s301 = scalar_lea.vmem [#allocation8], %s300
          %s303 = ssub.s32 128, 128
          %304 = vsyncadd %s298, %s303
          %s305 = sadd.s32 %s33, %s31
          %s306 = sadd.s32 %s305, %s32
          %s307 = smul.addr %s306, 128
          %s308 = scalar_lea.hbm %s3, %s307
          %s310 = sshll.u32 %s301, 4
          %s311 = int_to_ptr.vmem [resolvable:$true] %s310
          %313 = dma.hbm_to_vmem [thread:$0]  %s308, 128, %s311, %s298
        $region32: #{tpu_custom_call.1} parent=27 // pred_fallthru
          _
        // Predicated region
        $region33: #{tpu_custom_call.1} parent=27 // pred_check
          %p314 = pneg %p170
        $region34: #{tpu_custom_call.1} parent=27 // pred_check_branch
          %316 = sbr.rel (%p314) target = $region36
        $region35: #{tpu_custom_call.1} parent=27 // pred_region
          %s317 = sand.u32 %s24, 1
          %s318 = scalar_lea.sflag [#allocation9], %s317
          %s319 = sand.u32 %s160, 1
          %s320 = smul.addr %s319, 8
          %s321 = scalar_lea.vmem [#allocation10], %s320
          %s323 = ssub.s32 128, 128
          %324 = vsyncadd %s318, %s323
          %s325 = sadd.s32 %s33, %s31
          %s326 = sadd.s32 %s325, %s32
          %s327 = smul.addr %s326, 128
          %s328 = scalar_lea.hbm %s4, %s327
          %s330 = sshll.u32 %s321, 4
          %s331 = int_to_ptr.vmem [resolvable:$true] %s330
          %333 = dma.hbm_to_vmem [thread:$0]  %s328, 128, %s331, %s318
        $region36: #{tpu_custom_call.1} parent=27 // pred_fallthru
          _
      $region28: #{tpu_custom_call.1} parent=5 // pred_fallthru
        _
      %p334 = scmp.le.s32.totalorder 1, %s24
      %p335 = scmp.lt.s32.totalorder %s24, 3
      %p336 = pnand %p334, %p335
      %p337 = pneg %p336
      // Predicated region
      $region37: #{tpu_custom_call.1} parent=5 // pred_check
        _
      $region38: #{tpu_custom_call.1} parent=5 // pred_check_branch
        %339 = sbr.rel (%p336) target = $region40
      $region39: #{tpu_custom_call.1} parent=5 // pred_region
        %s340 = ssub.s32 %s24, 1
        // Predicated region
        $region41: #{tpu_custom_call.1} parent=39 // pred_check
          %p341 = pneg %p64
        $region42: #{tpu_custom_call.1} parent=39 // pred_check_branch
          %343 = sbr.rel (%p341) target = $region44
        $region43: #{tpu_custom_call.1} parent=39 // pred_region
          %344 = dma.done [#allocation3], 2048
        $region44: #{tpu_custom_call.1} parent=39 // pred_fallthru
          _
        // Predicated region
        $region45: #{tpu_custom_call.1} parent=39 // pred_check
          %p345 = pneg %p90
        $region46: #{tpu_custom_call.1} parent=39 // pred_check_branch
          %347 = sbr.rel (%p345) target = $region48
        $region47: #{tpu_custom_call.1} parent=39 // pred_region
          %348 = dma.done [#allocation6], 128
        $region48: #{tpu_custom_call.1} parent=39 // pred_fallthru
          _
        // Predicated region
        $region49: #{tpu_custom_call.1} parent=39 // pred_check
          %p349 = pneg %p116
        $region50: #{tpu_custom_call.1} parent=39 // pred_check_branch
          %351 = sbr.rel (%p349) target = $region52
        $region51: #{tpu_custom_call.1} parent=39 // pred_region
          %352 = dma.done [#allocation6], 128
        $region52: #{tpu_custom_call.1} parent=39 // pred_fallthru
          _
        %s353 = sand.u32 %s29, 1
        %s354 = scalar_lea.sflag [#allocation9], %s353
        %s355 = sand.u32 %s133, 1
        %s356 = smul.addr %s355, 8
        %s357 = scalar_lea.vmem [#allocation8], %s356
        // Predicated region
        $region53: #{tpu_custom_call.1} parent=39 // pred_check
          %p358 = pneg %p146
        $region54: #{tpu_custom_call.1} parent=39 // pred_check_branch
          %360 = sbr.rel (%p358) target = $region56
        $region55: #{tpu_custom_call.1} parent=39 // pred_region
          %361 = dma.done %s354, 128
        $region56: #{tpu_custom_call.1} parent=39 // pred_fallthru
          _
        %s362 = sand.u32 %s29, 1
        %s363 = scalar_lea.sflag [#allocation9], %s362
        %s364 = sand.u32 %s163, 1
        %s365 = smul.addr %s364, 8
        %s366 = scalar_lea.vmem [#allocation10], %s365
        // Predicated region
        $region57: #{tpu_custom_call.1} parent=39 // pred_check
          %p367 = pneg %p176
        $region58: #{tpu_custom_call.1} parent=39 // pred_check_branch
          %369 = sbr.rel (%p367) target = $region60
        $region59: #{tpu_custom_call.1} parent=39 // pred_region
          %370 = dma.done %s363, 128
        $region60: #{tpu_custom_call.1} parent=39 // pred_fallthru
          _
        %p371 = pneg %p64
        %p372 = pneg %p61
        %p373 = pneg %p90
        %p374 = pneg %p87
        %p375 = pneg %p116
        %p376 = pneg %p113
        %s377 = sand.u32 %s29, 1
        %s378 = scalar_lea.sflag [#allocation9], %s377
        %s379 = sand.u32 %s133, 1
        %s380 = smul.addr %s379, 8
        %s381 = scalar_lea.vmem [#allocation8], %s380
        %p382 = pneg %p146
        %p383 = pneg %p143
        %s384 = sand.u32 %s29, 1
        %s385 = scalar_lea.sflag [#allocation9], %s384
        %s386 = sand.u32 %s163, 1
        %s387 = smul.addr %s386, 8
        %s388 = scalar_lea.vmem [#allocation10], %s387
        %p389 = pneg %p176
        %p390 = pneg %p173
        %p391 = pneg %p206
        %p392 = pneg %p203
        %s393 = sand.u32 %s193, 1
        %s394 = scalar_lea.sflag [#allocation4], %s393
        %s395 = sand.u32 %s193, 1
        %s396 = smul.addr %s395, 8
        %s397 = scalar_lea.vmem [#allocation11], %s396
        %p398 = pneg %p236
        %p399 = pneg %p233
        %s400 = sand.u32 %s223, 1
        %s401 = scalar_lea.sflag [#allocation13], %s400
        %s402 = sand.u32 %s223, 1
        %s403 = smul.addr %s402, 8
        %s404 = scalar_lea.vmem [#allocation12], %s403
        %v406 = vld [vmem:[#allocation2] sm:$0xff]
        %v407 = vld [vmem:[#allocation2 + $0x8] sm:$0xff]
        %v408 = vld [vmem:[#allocation2 + $0x10] sm:$0xff]
        %v409 = vld [vmem:[#allocation2 + $0x18] sm:$0xff]
        %v410 = vld [vmem:[#allocation2 + $0x20] sm:$0xff]
        %v411 = vld [vmem:[#allocation2 + $0x28] sm:$0xff]
        %v412 = vld [vmem:[#allocation2 + $0x30] sm:$0xff]
        %v413 = vld [vmem:[#allocation2 + $0x38] sm:$0xff]
        %v414 = vld [vmem:[#allocation2 + $0x40] sm:$0xff]
        %v415 = vld [vmem:[#allocation2 + $0x48] sm:$0xff]
        %v416 = vld [vmem:[#allocation2 + $0x50] sm:$0xff]
        %v417 = vld [vmem:[#allocation2 + $0x58] sm:$0xff]
        %v418 = vld [vmem:[#allocation2 + $0x60] sm:$0xff]
        %v419 = vld [vmem:[#allocation2 + $0x68] sm:$0xff]
        %v420 = vld [vmem:[#allocation2 + $0x70] sm:$0xff]
        %v421 = vld [vmem:[#allocation2 + $0x78] sm:$0xff]
        %v422 = vld [vmem:[#allocation5] sm:$0xff]
        %v423 = vld [vmem:[#allocation7] sm:$0xff]
        %v424 = vld [vmem:[%s357] sm:$0xff]
        %v425 = vpack.c.bf16 %v424, %v424
        %v426 = vunpack.c.l.bf16 %v425
        %v427 = vsub.f32 %v424, %v426
        %v428 = vpack.c.bf16 %v427, %v427
        %v429 = vunpack.c.l.bf16 %v428
        %v430 = vsub.f32 %v427, %v429
        %v431 = vpack.c.bf16 %v430, %v430
        %v448 = vunpack.c.l.b16 %v406
        %v449 = vunpack.c.h.b16 %v406
        %v450 = vunpack.c.l.b16 %v407
        %v451 = vunpack.c.h.b16 %v407
        %v452 = vunpack.c.l.b16 %v408
        %v453 = vunpack.c.h.b16 %v408
        %v454 = vunpack.c.l.b16 %v409
        %v455 = vunpack.c.h.b16 %v409
        %v456 = vunpack.c.l.b16 %v410
        %v457 = vunpack.c.h.b16 %v410
        %v458 = vunpack.c.l.b16 %v411
        %v459 = vunpack.c.h.b16 %v411
        %v460 = vunpack.c.l.b16 %v412
        %v461 = vunpack.c.h.b16 %v412
        %v462 = vunpack.c.l.b16 %v413
        %v463 = vunpack.c.h.b16 %v413
        %v464 = vunpack.c.l.b16 %v414
        %v465 = vunpack.c.h.b16 %v414
        %v466 = vunpack.c.l.b16 %v415
        %v467 = vunpack.c.h.b16 %v415
        %v468 = vunpack.c.l.b16 %v416
        %v469 = vunpack.c.h.b16 %v416
        %v470 = vunpack.c.l.b16 %v417
        %v471 = vunpack.c.h.b16 %v417
        %v472 = vunpack.c.l.b16 %v418
        %v473 = vunpack.c.h.b16 %v418
        %v474 = vunpack.c.l.b16 %v419
        %v475 = vunpack.c.h.b16 %v419
        %v476 = vunpack.c.l.b16 %v420
        %v477 = vunpack.c.h.b16 %v420
        %v478 = vunpack.c.l.b16 %v421
        %v479 = vunpack.c.h.b16 %v421
        %v480 = vpack.c.b16 %v450, %v448
        %v481 = vpack.c.b16 %v451, %v449
        %v482 = vpack.c.b16 %v454, %v452
        %v483 = vpack.c.b16 %v455, %v453
        %v484 = vpack.c.b16 %v458, %v456
        %v485 = vpack.c.b16 %v459, %v457
        %v486 = vpack.c.b16 %v462, %v460
        %v487 = vpack.c.b16 %v463, %v461
        %v488 = vpack.c.b16 %v466, %v464
        %v489 = vpack.c.b16 %v467, %v465
        %v490 = vpack.c.b16 %v470, %v468
        %v491 = vpack.c.b16 %v471, %v469
        %v492 = vpack.c.b16 %v474, %v472
        %v493 = vpack.c.b16 %v475, %v473
        %v494 = vpack.c.b16 %v478, %v476
        %v495 = vpack.c.b16 %v479, %v477
        %512 = vmatprep.subr.bf16.mxu0 %v481
        %513 = vmatpush1.bf16.msra.mxu0 %v480
        %514 = vmatprep.subr.bf16.mxu0 %v483
        %515 = vmatpush1.bf16.msra.mxu0 %v482
        %516 = vmatprep.subr.bf16.mxu0 %v485
        %517 = vmatpush1.bf16.msra.mxu0 %v484
        %518 = vmatprep.subr.bf16.mxu0 %v487
        %519 = vmatpush1.bf16.msra.mxu0 %v486
        %520 = vmatprep.subr.bf16.mxu0 %v489
        %521 = vmatpush1.bf16.msra.mxu0 %v488
        %522 = vmatprep.subr.bf16.mxu0 %v491
        %523 = vmatpush1.bf16.msra.mxu0 %v490
        %524 = vmatprep.subr.bf16.mxu0 %v493
        %525 = vmatpush1.bf16.msra.mxu0 %v492
        %526 = vmatprep.subr.bf16.mxu0 %v495
        %527 = vmatpush1.bf16.msra.mxu0 %v494
        %528 = vmatprep.subr.bf16.mxu0 0
        %529 = vmatpush1.bf16.msra.mxu0 0
        %530 = vmatprep.subr.bf16.mxu0 0
        %531 = vmatpush1.bf16.msra.mxu0 0
        %532 = vmatprep.subr.bf16.mxu0 0
        %533 = vmatpush1.bf16.msra.mxu0 0
        %534 = vmatprep.subr.bf16.mxu0 0
        %535 = vmatpush1.bf16.msra.mxu0 0
        %536 = vmatprep.subr.bf16.mxu0 0
        %537 = vmatpush1.bf16.msra.mxu0 0
        %538 = vmatprep.subr.bf16.mxu0 0
        %539 = vmatpush1.bf16.msra.mxu0 0
        %540 = vmatprep.subr.bf16.mxu0 0
        %541 = vmatpush1.bf16.msra.mxu0 0
        %542 = vmatprep.subr.bf16.mxu0 0
        %543 = vmatpush1.bf16.msra.mxu0 0
        %544 = vmatprep.mubr.bf16.mxu0 0
        %545 = vmatmul.mubr.bf16.gmra.mrb[0].mxu0 %v428
        %v546 = vpop.f32.mrb[0].mxu0
        %v547 = vadd.f32 0.0, %v546
        %v548 = vpop.f32.mrb[0].mxu0
        %v549 = vadd.f32 0.0, %v548
        %v550 = vpop.f32.mrb[0].mxu0
        %v551 = vpop.f32.mrb[0].mxu0
        %552 = vdwg.mxu0
        %553 = vmatprep.subr.bf16.mxu0 %v481
        %554 = vmatpush1.bf16.msra.mxu0 %v480
        %555 = vmatprep.subr.bf16.mxu0 %v483
        %556 = vmatpush1.bf16.msra.mxu0 %v482
        %557 = vmatprep.subr.bf16.mxu0 %v485
        %558 = vmatpush1.bf16.msra.mxu0 %v484
        %559 = vmatprep.subr.bf16.mxu0 %v487
        %560 = vmatpush1.bf16.msra.mxu0 %v486
        %561 = vmatprep.subr.bf16.mxu0 %v489
        %562 = vmatpush1.bf16.msra.mxu0 %v488
        %563 = vmatprep.subr.bf16.mxu0 %v491
        %564 = vmatpush1.bf16.msra.mxu0 %v490
        %565 = vmatprep.subr.bf16.mxu0 %v493
        %566 = vmatpush1.bf16.msra.mxu0 %v492
        %567 = vmatprep.subr.bf16.mxu0 %v495
        %568 = vmatpush1.bf16.msra.mxu0 %v494
        %569 = vmatprep.subr.bf16.mxu0 0
        %570 = vmatpush1.bf16.msra.mxu0 0
        %571 = vmatprep.subr.bf16.mxu0 0
        %572 = vmatpush1.bf16.msra.mxu0 0
        %573 = vmatprep.subr.bf16.mxu0 0
        %574 = vmatpush1.bf16.msra.mxu0 0
        %575 = vmatprep.subr.bf16.mxu0 0
        %576 = vmatpush1.bf16.msra.mxu0 0
        %577 = vmatprep.subr.bf16.mxu0 0
        %578 = vmatpush1.bf16.msra.mxu0 0
        %579 = vmatprep.subr.bf16.mxu0 0
        %580 = vmatpush1.bf16.msra.mxu0 0
        %581 = vmatprep.subr.bf16.mxu0 0
        %582 = vmatpush1.bf16.msra.mxu0 0
        %583 = vmatprep.subr.bf16.mxu0 0
        %584 = vmatpush1.bf16.msra.mxu0 0
        %585 = vmatprep.mubr.bf16.mxu0 0
        %586 = vmatmul.mubr.bf16.gmra.mrb[0].mxu0 %v425
        %v587 = vpop.f32.mrb[0].mxu0
        %v588 = vadd.f32 %v547, %v587
        %v589 = vpop.f32.mrb[0].mxu0
        %v590 = vadd.f32 %v549, %v589
        %v591 = vpop.f32.mrb[0].mxu0
        %v592 = vpop.f32.mrb[0].mxu0
        %593 = vdwg.mxu0
        %594 = vmatprep.subr.bf16.mxu0 %v481
        %595 = vmatpush1.bf16.msra.mxu0 %v480
        %596 = vmatprep.subr.bf16.mxu0 %v483
        %597 = vmatpush1.bf16.msra.mxu0 %v482
        %598 = vmatprep.subr.bf16.mxu0 %v485
        %599 = vmatpush1.bf16.msra.mxu0 %v484
        %600 = vmatprep.subr.bf16.mxu0 %v487
        %601 = vmatpush1.bf16.msra.mxu0 %v486
        %602 = vmatprep.subr.bf16.mxu0 %v489
        %603 = vmatpush1.bf16.msra.mxu0 %v488
        %604 = vmatprep.subr.bf16.mxu0 %v491
        %605 = vmatpush1.bf16.msra.mxu0 %v490
        %606 = vmatprep.subr.bf16.mxu0 %v493
        %607 = vmatpush1.bf16.msra.mxu0 %v492
        %608 = vmatprep.subr.bf16.mxu0 %v495
        %609 = vmatpush1.bf16.msra.mxu0 %v494
        %610 = vmatprep.subr.bf16.mxu0 0
        %611 = vmatpush1.bf16.msra.mxu0 0
        %612 = vmatprep.subr.bf16.mxu0 0
        %613 = vmatpush1.bf16.msra.mxu0 0
        %614 = vmatprep.subr.bf16.mxu0 0
        %615 = vmatpush1.bf16.msra.mxu0 0
        %616 = vmatprep.subr.bf16.mxu0 0
        %617 = vmatpush1.bf16.msra.mxu0 0
        %618 = vmatprep.subr.bf16.mxu0 0
        %619 = vmatpush1.bf16.msra.mxu0 0
        %620 = vmatprep.subr.bf16.mxu0 0
        %621 = vmatpush1.bf16.msra.mxu0 0
        %622 = vmatprep.subr.bf16.mxu0 0
        %623 = vmatpush1.bf16.msra.mxu0 0
        %624 = vmatprep.subr.bf16.mxu0 0
        %625 = vmatpush1.bf16.msra.mxu0 0
        %626 = vmatprep.mubr.bf16.mxu0 0
        %627 = vmatmul.mubr.bf16.gmra.mrb[0].mxu0 %v431
        %v628 = vpop.f32.mrb[0].mxu0
        %v629 = vadd.f32 0.0, %v628
        %v630 = vpop.f32.mrb[0].mxu0
        %v631 = vadd.f32 0.0, %v630
        %v632 = vpop.f32.mrb[0].mxu0
        %v633 = vpop.f32.mrb[0].mxu0
        %634 = vdwg.mxu0
        %v635 = vadd.f32 %v588, %v629
        %v636 = vadd.f32 %v590, %v631
        %v637 = vmul.f32 %v635, %v422
        %v638 = vmul.f32 %v636, %v423
        %v639 = vadd.f32 %v637, %v638
        %640 = vst [vmem:[%s397] sm:$0xff] %v639
        %v641 = vld [vmem:[%s366] sm:$0xff]
        %v642 = vpack.c.bf16 %v641, %v641
        %v643 = vunpack.c.l.bf16 %v642
        %v644 = vsub.f32 %v641, %v643
        %v645 = vpack.c.bf16 %v644, %v644
        %v646 = vunpack.c.l.bf16 %v645
        %v647 = vsub.f32 %v644, %v646
        %v648 = vpack.c.bf16 %v647, %v647
        %649 = vmatprep.subr.bf16.mxu0 %v481
        %650 = vmatpush1.bf16.msra.mxu0 %v480
        %651 = vmatprep.subr.bf16.mxu0 %v483
        %652 = vmatpush1.bf16.msra.mxu0 %v482
        %653 = vmatprep.subr.bf16.mxu0 %v485
        %654 = vmatpush1.bf16.msra.mxu0 %v484
        %655 = vmatprep.subr.bf16.mxu0 %v487
        %656 = vmatpush1.bf16.msra.mxu0 %v486
        %657 = vmatprep.subr.bf16.mxu0 %v489
        %658 = vmatpush1.bf16.msra.mxu0 %v488
        %659 = vmatprep.subr.bf16.mxu0 %v491
        %660 = vmatpush1.bf16.msra.mxu0 %v490
        %661 = vmatprep.subr.bf16.mxu0 %v493
        %662 = vmatpush1.bf16.msra.mxu0 %v492
        %663 = vmatprep.subr.bf16.mxu0 %v495
        %664 = vmatpush1.bf16.msra.mxu0 %v494
        %665 = vmatprep.subr.bf16.mxu0 0
        %666 = vmatpush1.bf16.msra.mxu0 0
        %667 = vmatprep.subr.bf16.mxu0 0
        %668 = vmatpush1.bf16.msra.mxu0 0
        %669 = vmatprep.subr.bf16.mxu0 0
        %670 = vmatpush1.bf16.msra.mxu0 0
        %671 = vmatprep.subr.bf16.mxu0 0
        %672 = vmatpush1.bf16.msra.mxu0 0
        %673 = vmatprep.subr.bf16.mxu0 0
        %674 = vmatpush1.bf16.msra.mxu0 0
        %675 = vmatprep.subr.bf16.mxu0 0
        %676 = vmatpush1.bf16.msra.mxu0 0
        %677 = vmatprep.subr.bf16.mxu0 0
        %678 = vmatpush1.bf16.msra.mxu0 0
        %679 = vmatprep.subr.bf16.mxu0 0
        %680 = vmatpush1.bf16.msra.mxu0 0
        %681 = vmatprep.mubr.bf16.mxu0 0
        %682 = vmatmul.mubr.bf16.gmra.mrb[0].mxu0 %v645
        %v683 = vpop.f32.mrb[0].mxu0
        %v684 = vadd.f32 0.0, %v683
        %v685 = vpop.f32.mrb[0].mxu0
        %v686 = vadd.f32 0.0, %v685
        %v687 = vpop.f32.mrb[0].mxu0
        %v688 = vpop.f32.mrb[0].mxu0
        %689 = vdwg.mxu0
        %690 = vmatprep.subr.bf16.mxu0 %v481
        %691 = vmatpush1.bf16.msra.mxu0 %v480
        %692 = vmatprep.subr.bf16.mxu0 %v483
        %693 = vmatpush1.bf16.msra.mxu0 %v482
        %694 = vmatprep.subr.bf16.mxu0 %v485
        %695 = vmatpush1.bf16.msra.mxu0 %v484
        %696 = vmatprep.subr.bf16.mxu0 %v487
        %697 = vmatpush1.bf16.msra.mxu0 %v486
        %698 = vmatprep.subr.bf16.mxu0 %v489
        %699 = vmatpush1.bf16.msra.mxu0 %v488
        %700 = vmatprep.subr.bf16.mxu0 %v491
        %701 = vmatpush1.bf16.msra.mxu0 %v490
        %702 = vmatprep.subr.bf16.mxu0 %v493
        %703 = vmatpush1.bf16.msra.mxu0 %v492
        %704 = vmatprep.subr.bf16.mxu0 %v495
        %705 = vmatpush1.bf16.msra.mxu0 %v494
        %706 = vmatprep.subr.bf16.mxu0 0
        %707 = vmatpush1.bf16.msra.mxu0 0
        %708 = vmatprep.subr.bf16.mxu0 0
        %709 = vmatpush1.bf16.msra.mxu0 0
        %710 = vmatprep.subr.bf16.mxu0 0
        %711 = vmatpush1.bf16.msra.mxu0 0
        %712 = vmatprep.subr.bf16.mxu0 0
        %713 = vmatpush1.bf16.msra.mxu0 0
        %714 = vmatprep.subr.bf16.mxu0 0
        %715 = vmatpush1.bf16.msra.mxu0 0
        %716 = vmatprep.subr.bf16.mxu0 0
        %717 = vmatpush1.bf16.msra.mxu0 0
        %718 = vmatprep.subr.bf16.mxu0 0
        %719 = vmatpush1.bf16.msra.mxu0 0
        %720 = vmatprep.subr.bf16.mxu0 0
        %721 = vmatpush1.bf16.msra.mxu0 0
        %722 = vmatprep.mubr.bf16.mxu0 0
        %723 = vmatmul.mubr.bf16.gmra.mrb[0].mxu0 %v642
        %v724 = vpop.f32.mrb[0].mxu0
        %v725 = vadd.f32 %v684, %v724
        %v726 = vpop.f32.mrb[0].mxu0
        %v727 = vadd.f32 %v686, %v726
        %v728 = vpop.f32.mrb[0].mxu0
        %v729 = vpop.f32.mrb[0].mxu0
        %730 = vdwg.mxu0
        %731 = vmatprep.subr.bf16.mxu0 %v481
        %732 = vmatpush1.bf16.msra.mxu0 %v480
        %733 = vmatprep.subr.bf16.mxu0 %v483
        %734 = vmatpush1.bf16.msra.mxu0 %v482
        %735 = vmatprep.subr.bf16.mxu0 %v485
        %736 = vmatpush1.bf16.msra.mxu0 %v484
        %737 = vmatprep.subr.bf16.mxu0 %v487
        %738 = vmatpush1.bf16.msra.mxu0 %v486
        %739 = vmatprep.subr.bf16.mxu0 %v489
        %740 = vmatpush1.bf16.msra.mxu0 %v488
        %741 = vmatprep.subr.bf16.mxu0 %v491
        %742 = vmatpush1.bf16.msra.mxu0 %v490
        %743 = vmatprep.subr.bf16.mxu0 %v493
        %744 = vmatpush1.bf16.msra.mxu0 %v492
        %745 = vmatprep.subr.bf16.mxu0 %v495
        %746 = vmatpush1.bf16.msra.mxu0 %v494
        %747 = vmatprep.subr.bf16.mxu0 0
        %748 = vmatpush1.bf16.msra.mxu0 0
        %749 = vmatprep.subr.bf16.mxu0 0
        %750 = vmatpush1.bf16.msra.mxu0 0
        %751 = vmatprep.subr.bf16.mxu0 0
        %752 = vmatpush1.bf16.msra.mxu0 0
        %753 = vmatprep.subr.bf16.mxu0 0
        %754 = vmatpush1.bf16.msra.mxu0 0
        %755 = vmatprep.subr.bf16.mxu0 0
        %756 = vmatpush1.bf16.msra.mxu0 0
        %757 = vmatprep.subr.bf16.mxu0 0
        %758 = vmatpush1.bf16.msra.mxu0 0
        %759 = vmatprep.subr.bf16.mxu0 0
        %760 = vmatpush1.bf16.msra.mxu0 0
        %761 = vmatprep.subr.bf16.mxu0 0
        %762 = vmatpush1.bf16.msra.mxu0 0
        %763 = vmatprep.mubr.bf16.mxu0 0
        %764 = vmatmul.mubr.bf16.gmra.mrb[0].mxu0 %v648
        %v765 = vpop.f32.mrb[0].mxu0
        %v766 = vadd.f32 0.0, %v765
        %v767 = vpop.f32.mrb[0].mxu0
        %v768 = vadd.f32 0.0, %v767
        %v769 = vpop.f32.mrb[0].mxu0
        %v770 = vpop.f32.mrb[0].mxu0
        %771 = vdwg.mxu0
        %v772 = vadd.f32 %v725, %v766
        %v773 = vadd.f32 %v727, %v768
        %v774 = vmul.f32 %v772, %v422
        %v775 = vmul.f32 %v773, %v423
        %v776 = vadd.f32 %v774, %v775
        %777 = vst [vmem:[%s404] sm:$0xff] %v776
        %s778 = sand.u32 %s193, 1
        %s779 = scalar_lea.sflag [#allocation4], %s778
        %s780 = sand.u32 %s193, 1
        %s781 = smul.addr %s780, 8
        %s782 = scalar_lea.vmem [#allocation11], %s781
        %s783 = sand.u32 %s223, 1
        %s784 = scalar_lea.sflag [#allocation13], %s783
        %s785 = sand.u32 %s223, 1
        %s786 = smul.addr %s785, 8
        %s787 = scalar_lea.vmem [#allocation12], %s786
        // Predicated region
        $region61: #{tpu_custom_call.1} parent=39 // pred_check
          %p788 = pneg %p203
        $region62: #{tpu_custom_call.1} parent=39 // pred_check_branch
          %790 = sbr.rel (%p788) target = $region64
        $region63: #{tpu_custom_call.1} parent=39 // pred_region
          %s792 = ssub.s32 128, 128
          %793 = vsyncadd %s779, %s792
          %s794 = sadd.s32 %s36, %s34
          %s795 = sadd.s32 %s794, %s35
          %s796 = smul.addr %s795, 128
          %s797 = scalar_lea.hbm %s5, %s796
          %s799 = sshll.u32 %s782, 4
          %s800 = int_to_ptr.vmem [resolvable:$true] %s799
          %802 = dma.vmem_to_hbm [thread:$0]  %s800, 128, %s797, %s779
        $region64: #{tpu_custom_call.1} parent=39 // pred_fallthru
          _
        // Predicated region
        $region65: #{tpu_custom_call.1} parent=39 // pred_check
          %p803 = pneg %p233
        $region66: #{tpu_custom_call.1} parent=39 // pred_check_branch
          %805 = sbr.rel (%p803) target = $region68
        $region67: #{tpu_custom_call.1} parent=39 // pred_region
          %s807 = ssub.s32 128, 128
          %808 = vsyncadd %s784, %s807
          %s809 = sadd.s32 %s36, %s34
          %s810 = sadd.s32 %s809, %s35
          %s811 = smul.addr %s810, 128
          %s812 = scalar_lea.hbm %s6, %s811
          %s814 = sshll.u32 %s787, 4
          %s815 = int_to_ptr.vmem [resolvable:$true] %s814
          %817 = dma.vmem_to_hbm [thread:$0]  %s815, 128, %s812, %s784
        $region68: #{tpu_custom_call.1} parent=39 // pred_fallthru
          _
      $region40: #{tpu_custom_call.1} parent=5 // pred_fallthru
        _
      %p818 = scmp.le.s32.totalorder 2, %s24
      // Predicated region
      $region69: #{tpu_custom_call.1} parent=5 // pred_check
        %p819 = pneg %p818
      $region70: #{tpu_custom_call.1} parent=5 // pred_check_branch
        %821 = sbr.rel (%p819) target = $region72
      $region71: #{tpu_custom_call.1} parent=5 // pred_region
        %s822 = ssub.s32 %s24, 2
        // Predicated region
        $region73: #{tpu_custom_call.1} parent=71 // pred_check
          %p823 = pneg %p209
        $region74: #{tpu_custom_call.1} parent=71 // pred_check_branch
          %825 = sbr.rel (%p823) target = $region76
        $region75: #{tpu_custom_call.1} parent=71 // pred_region
          %s826 = sand.u32 %s194, 1
          %s827 = scalar_lea.sflag [#allocation4], %s826
          %s828 = sand.u32 %s194, 1
          %s829 = smul.addr %s828, 8
          %s830 = scalar_lea.vmem [#allocation11], %s829
          %831 = dma.done %s827, 128
        $region76: #{tpu_custom_call.1} parent=71 // pred_fallthru
          _
        // Predicated region
        $region77: #{tpu_custom_call.1} parent=71 // pred_check
          %p832 = pneg %p239
        $region78: #{tpu_custom_call.1} parent=71 // pred_check_branch
          %834 = sbr.rel (%p832) target = $region80
        $region79: #{tpu_custom_call.1} parent=71 // pred_region
          %s835 = sand.u32 %s224, 1
          %s836 = scalar_lea.sflag [#allocation13], %s835
          %s837 = sand.u32 %s224, 1
          %s838 = smul.addr %s837, 8
          %s839 = scalar_lea.vmem [#allocation12], %s838
          %840 = dma.done %s836, 128
        $region80: #{tpu_custom_call.1} parent=71 // pred_fallthru
          _
      $region72: #{tpu_custom_call.1} parent=5 // pred_fallthru
        _
    $region6: #{tpu_custom_call.1} parent=1 // loop_footer
      %s28 = sadd.s32 1, %s24
    $region7: #{tpu_custom_call.1} parent=1 // loop_footer_branch
      %23 = sbr.rel target = $region3
    $region8: #{tpu_custom_call.1} parent=1 // loop_exit
      _
    %841 = vsyncpa [#allocation3], 1
    %s842 = scalar_lea.sflag [#allocation3], 1
    %843 = vsyncpa %s842, 1
    %844 = vsyncpa [#allocation6], 1
    %845 = vsyncpa [#allocation9], 1
    %s846 = scalar_lea.sflag [#allocation9], 1
    %847 = vsyncpa %s846, 1
    %848 = vsyncpa [#allocation4], 1
    %s849 = scalar_lea.sflag [#allocation4], 1
    %850 = vsyncpa %s849, 1
    %851 = vsyncpa [#allocation13], 1
    %s852 = scalar_lea.sflag [#allocation13], 1
    %853 = vsyncpa %s852, 1

</llo_original>
